<compile_context>
chip_gen: v6e
topology: v6e:2x2x1
jax: 0.10.0
libtpu: 0.0.40
codegen_flags: <defaults>
</compile_context>

<pallas_src>
import jax
import jax.numpy as jnp
from jax.experimental import pallas as pl
from jax.experimental.pallas import tpu as pltpu

# ------------------------- hyper-parameters -------------------------
BATCH      = 2
CHANNELS   = 8
WINDOW     = 16
H_DIM      = 32
Z_DIM      = 16
NODE_DIM   = 30
K_TOP      = 4
ALPHA      = 3.0
LAMBDA_GCN = 0.5

BC = BATCH * CHANNELS            # 16 rows after folding batch into M

# ----- packed parameter slab layout: (PARAM_ROWS, 128) f32, zero padded -----
PARAM_LANES = 128
R_ADJ = 0                        # (BC, BC)   blended block-diag adjacency
R_WE1 = 16                       # (W,  H)    encoder Linear 0
R_WE2 = 32                       # (H,  H)    encoder Linear 2
R_WHZ = 64                       # (H,  Z)    h_z_net
R_WZ  = 96                       # (Z,  2Z)   fused [z_mean | z_logvar]
R_WD1 = 112                      # (Z,  H)    decoder Linear 0
R_WD2 = 128                      # (H,  H)    decoder Linear 2
R_WX  = 160                      # (H,  2W)   fused [x_mean | x_logvar]
R_B   = 192                      # 7 bias rows: be1,be2,bhz,bz,bd1,bd2,bx
PARAM_ROWS = 200                 # padded to a multiple of 8 sublanes

# ----- packed data slab: (BC, W + Z + W) = [x | eps_z | eps_x] -----
DATA_LANES = WINDOW + Z_DIM + WINDOW

# ----- packed output slab: (BC, 128), lane layout:
#   [0:W)        x_hat
#   [W:3W)       [x_mean | x_logvar]
#   [3W:3W+2Z)   [z_mean | z_logvar]
#   rest         zero padding (keeps the store lane-dense / 128-wide)
OUT_LANES = 128


# ------------------------- Pallas kernel -------------------------
def graphvae_kernel(data_ref, p_ref, out_ref):
    f32 = jnp.float32

    x     = data_ref[:, 0:WINDOW]
    eps_z = data_ref[:, WINDOW:WINDOW + Z_DIM]
    eps_x = data_ref[:, WINDOW + Z_DIM:DATA_LANES]

    # static slices of the packed parameter slab (views, no extra DMA)
    adj = p_ref[R_ADJ:R_ADJ + BC, 0:BC]
    we1 = p_ref[R_WE1:R_WE1 + WINDOW, 0:H_DIM]
    we2 = p_ref[R_WE2:R_WE2 + H_DIM, 0:H_DIM]
    whz = p_ref[R_WHZ:R_WHZ + H_DIM, 0:Z_DIM]
    wz  = p_ref[R_WZ:R_WZ + Z_DIM, 0:2 * Z_DIM]
    wd1 = p_ref[R_WD1:R_WD1 + Z_DIM, 0:H_DIM]
    wd2 = p_ref[R_WD2:R_WD2 + H_DIM, 0:H_DIM]
    wx  = p_ref[R_WX:R_WX + H_DIM, 0:2 * WINDOW]
    be1 = p_ref[R_B + 0:R_B + 1, 0:H_DIM]
    be2 = p_ref[R_B + 1:R_B + 2, 0:H_DIM]
    bhz = p_ref[R_B + 2:R_B + 3, 0:Z_DIM]
    bz  = p_ref[R_B + 3:R_B + 4, 0:2 * Z_DIM]
    bd1 = p_ref[R_B + 4:R_B + 5, 0:H_DIM]
    bd2 = p_ref[R_B + 5:R_B + 6, 0:H_DIM]
    bx  = p_ref[R_B + 6:R_B + 7, 0:2 * WINDOW]

    # encoder: Linear -> ReLU -> Linear -> ReLU   (batch folded into M=16)
    h = jax.nn.relu(jnp.dot(x, we1, preferred_element_type=f32) + be1)
    h = jax.nn.relu(jnp.dot(h, we2, preferred_element_type=f32) + be2)

    # h_z + GCN merge (adj already holds lambda*A + (1-lambda)*I, block-diag
    # over batch, so a single matmul replaces matmul + elementwise blend)
    h_z = jnp.dot(h, whz, preferred_element_type=f32) + bhz
    merge = jnp.dot(adj, h_z, preferred_element_type=f32)

    # fused z heads + reparameterize (eps precomputed, matches torch.randn use)
    zheads = jnp.dot(merge, wz, preferred_element_type=f32) + bz
    z_mean = zheads[:, 0:Z_DIM]
    z_logvar = zheads[:, Z_DIM:2 * Z_DIM]
    z = z_mean + jnp.exp(0.5 * z_logvar) * eps_z

    # decoder: Linear -> ReLU -> Linear -> ReLU
    hd = jax.nn.relu(jnp.dot(z, wd1, preferred_element_type=f32) + bd1)
    hd = jax.nn.relu(jnp.dot(hd, wd2, preferred_element_type=f32) + bd2)

    # fused x heads + second reparameterize
    xheads = jnp.dot(hd, wx, preferred_element_type=f32) + bx
    x_mean = xheads[:, 0:WINDOW]
    x_logvar = xheads[:, WINDOW:2 * WINDOW]
    x_hat = x_mean + jnp.exp(0.5 * x_logvar) * eps_x

    # single lane-dense (BC, 128) output slab -> one write-back DMA
    out_ref[...] = jnp.zeros_like(out_ref)
    out_ref[:, 0:WINDOW] = x_hat
    out_ref[:, WINDOW:3 * WINDOW] = xheads
    out_ref[:, 3 * WINDOW:3 * WINDOW + 2 * Z_DIM] = zheads


# ------------------------- wrapper -------------------------
def pack_param_slab(adj_blend, we1, be1, we2, be2, whz, bhz,
                    wz, bz, wd1, bd1, wd2, bd2, wx, bx):
    slab = jnp.zeros((PARAM_ROWS, PARAM_LANES), jnp.float32)
    slab = slab.at[R_ADJ:R_ADJ + BC, 0:BC].set(adj_blend)
    slab = slab.at[R_WE1:R_WE1 + WINDOW, 0:H_DIM].set(we1)
    slab = slab.at[R_WE2:R_WE2 + H_DIM, 0:H_DIM].set(we2)
    slab = slab.at[R_WHZ:R_WHZ + H_DIM, 0:Z_DIM].set(whz)
    slab = slab.at[R_WZ:R_WZ + Z_DIM, 0:2 * Z_DIM].set(wz)
    slab = slab.at[R_WD1:R_WD1 + Z_DIM, 0:H_DIM].set(wd1)
    slab = slab.at[R_WD2:R_WD2 + H_DIM, 0:H_DIM].set(wd2)
    slab = slab.at[R_WX:R_WX + H_DIM, 0:2 * WINDOW].set(wx)
    slab = slab.at[R_B + 0, 0:H_DIM].set(be1[0])
    slab = slab.at[R_B + 1, 0:H_DIM].set(be2[0])
    slab = slab.at[R_B + 2, 0:Z_DIM].set(bhz[0])
    slab = slab.at[R_B + 3, 0:2 * Z_DIM].set(bz[0])
    slab = slab.at[R_B + 4, 0:H_DIM].set(bd1[0])
    slab = slab.at[R_B + 5, 0:H_DIM].set(bd2[0])
    slab = slab.at[R_B + 6, 0:2 * WINDOW].set(bx[0])
    return slab


@jax.jit
def graphvae_forward(x, eps_z, eps_x, adj, params):
    (we1, be1, we2, be2, whz, bhz, wzm, bzm, wzl, bzl,
     wd1, bd1, wd2, bd2, wxm, bxm, wxl, bxl) = params

    # fuse mean/logvar heads
    wz = jnp.concatenate([wzm, wzl], axis=1)
    bz = jnp.concatenate([bzm, bzl], axis=1)
    wx = jnp.concatenate([wxm, wxl], axis=1)
    bx = jnp.concatenate([bxm, bxl], axis=1)

    # fold GCN blend into the adjacency and fold batch into a block-diag matrix
    a_c = LAMBDA_GCN * adj + (1.0 - LAMBDA_GCN) * jnp.eye(CHANNELS, dtype=jnp.float32)
    adj_blend = jnp.kron(jnp.eye(BATCH, dtype=jnp.float32), a_c)       # (BC, BC)

    slab = pack_param_slab(adj_blend, we1, be1, we2, be2, whz, bhz,
                           wz, bz, wd1, bd1, wd2, bd2, wx, bx)
    data = jnp.concatenate([x.reshape(BC, WINDOW),
                            eps_z.reshape(BC, Z_DIM),
                            eps_x.reshape(BC, WINDOW)], axis=1)

    out = pl.pallas_call(
        graphvae_kernel,
        out_shape=jax.ShapeDtypeStruct((BC, OUT_LANES), jnp.float32),
        grid_spec=pltpu.PrefetchScalarGridSpec(
            num_scalar_prefetch=0,
            grid=(1,),
            in_specs=[
                pl.BlockSpec((BC, DATA_LANES), lambda i: (0, 0)),
                pl.BlockSpec((PARAM_ROWS, PARAM_LANES), lambda i: (0, 0)),
            ],
            out_specs=pl.BlockSpec((BC, OUT_LANES), lambda i: (0, 0)),
        ),
        compiler_params=pltpu.CompilerParams(
            dimension_semantics=("arbitrary",)),
    )(data, slab)

    x_hat    = out[:, 0:WINDOW].reshape(BATCH, CHANNELS, WINDOW)
    x_mean   = out[:, WINDOW:2 * WINDOW].reshape(BATCH, CHANNELS, WINDOW)
    x_logvar = out[:, 2 * WINDOW:3 * WINDOW].reshape(BATCH, CHANNELS, WINDOW)
    z_mean   = out[:, 3 * WINDOW:3 * WINDOW + Z_DIM].reshape(BATCH, CHANNELS, Z_DIM)
    z_logvar = out[:, 3 * WINDOW + Z_DIM:3 * WINDOW + 2 * Z_DIM].reshape(
        BATCH, CHANNELS, Z_DIM)
    return x_hat, z_mean, z_logvar, x_mean, x_logvar


# ------------------------- adjacency (plain JAX glue) -------------------------
def get_adjmat(node_emb, w_emb, b_emb):
    # node_emb1(idx) with idx = arange(C) is just the embedding table
    e = jnp.tanh(ALPHA * (node_emb @ w_emb + b_emb))          # emb_lin1 + tanh
    a = e @ e.T
    adj = jax.nn.relu(ALPHA * jnp.tanh(a))
    _, t1 = jax.lax.top_k(adj, K_TOP)
    mask = jnp.zeros((CHANNELS, CHANNELS), jnp.float32)
    mask = mask.at[jnp.arange(CHANNELS)[:, None], t1].set(1.0)
    adj = adj * mask
    adj = adj + jnp.eye(CHANNELS, dtype=jnp.float32)
    d = adj.sum(axis=1)
    adj = adj / d[:, None]
    return adj


# ------------------------- pure-JAX reference (sanity check) -------------------------
def graphvae_reference(x, eps_z, eps_x, adj, params):
    (we1, be1, we2, be2, whz, bhz, wzm, bzm, wzl, bzl,
     wd1, bd1, wd2, bd2, wxm, bxm, wxl, bxl) = params
    h = jax.nn.relu(x @ we1 + be1)
    h = jax.nn.relu(h @ we2 + be2)
    h_z = h @ whz + bhz
    merge = (LAMBDA_GCN * jnp.einsum('ij,bjk->bik', adj, h_z)
             + (1.0 - LAMBDA_GCN) * h_z)
    z_mean = merge @ wzm + bzm
    z_logvar = merge @ wzl + bzl
    z = z_mean + jnp.exp(0.5 * z_logvar) * eps_z
    hd = jax.nn.relu(z @ wd1 + bd1)
    hd = jax.nn.relu(hd @ wd2 + bd2)
    x_mean = hd @ wxm + bxm
    x_logvar = hd @ wxl + bxl
    x_hat = x_mean + jnp.exp(0.5 * x_logvar) * eps_x
    return x_hat, z_mean, z_logvar, x_mean, x_logvar


# ------------------------- deterministic parameter init -------------------------
def linear_params(key, in_dim, out_dim):
    k1, k2 = jax.random.split(key)
    bound = float(in_dim) ** -0.5
    w = jax.random.uniform(k1, (in_dim, out_dim), jnp.float32, -bound, bound)
    b = jax.random.uniform(k2, (1, out_dim), jnp.float32, -bound, bound)
    return w, b


if __name__ == "__main__":
    root = jax.random.PRNGKey(0)
    keys = jax.random.split(root, 16)

    # module parameters (all Linear weights stored as (in, out))
    we1, be1 = linear_params(keys[0], WINDOW, H_DIM)     # encoder[0]
    we2, be2 = linear_params(keys[1], H_DIM, H_DIM)      # encoder[2]
    whz, bhz = linear_params(keys[2], H_DIM, Z_DIM)      # h_z_net
    wzm, bzm = linear_params(keys[3], Z_DIM, Z_DIM)      # z_mean_net
    wzl, bzl = linear_params(keys[4], Z_DIM, Z_DIM)      # z_logvar_net
    wd1, bd1 = linear_params(keys[5], Z_DIM, H_DIM)      # decoder[0]
    wd2, bd2 = linear_params(keys[6], H_DIM, H_DIM)      # decoder[2]
    wxm, bxm = linear_params(keys[7], H_DIM, WINDOW)     # x_mean_net
    wxl, bxl = linear_params(keys[8], H_DIM, WINDOW)     # x_logvar_net
    node_emb = jax.random.normal(keys[9], (CHANNELS, NODE_DIM), jnp.float32)
    w_emb, b_emb = linear_params(keys[10], NODE_DIM, NODE_DIM)

    params = (we1, be1, we2, be2, whz, bhz, wzm, bzm, wzl, bzl,
              wd1, bd1, wd2, bd2, wxm, bxm, wxl, bxl)

    # inputs + reparameterization noise
    x = jax.random.normal(keys[11], (BATCH, CHANNELS, WINDOW), jnp.float32)
    eps_z = jax.random.normal(keys[12], (BATCH, CHANNELS, Z_DIM), jnp.float32)
    eps_x = jax.random.normal(keys[13], (BATCH, CHANNELS, WINDOW), jnp.float32)

    adj = get_adjmat(node_emb, w_emb, b_emb)

    outs = graphvae_forward(x, eps_z, eps_x, adj, params)
    x_hat, z_mean, z_logvar, x_mean, x_logvar = outs
    jax.block_until_ready((x_hat, z_mean, z_logvar, x_mean, x_logvar, adj))

    # shape checks
    assert x_hat.shape == (BATCH, CHANNELS, WINDOW)
    assert z_mean.shape == (BATCH, CHANNELS, Z_DIM)
    assert z_logvar.shape == (BATCH, CHANNELS, Z_DIM)
    assert x_mean.shape == (BATCH, CHANNELS, WINDOW)
    assert x_logvar.shape == (BATCH, CHANNELS, WINDOW)
    assert adj.shape == (CHANNELS, CHANNELS)

    # numerical check against a plain-JAX reference (loose tol for MXU paths)
    refs = graphvae_reference(x, eps_z, eps_x, adj, params)
    for got, ref in zip(outs, refs):
        assert jnp.allclose(got, ref, rtol=5e-2, atol=5e-2), "mismatch vs reference"

    print("KERNEL_OK")
</pallas_src>

<mosaic_0001>
module attributes {stable_mosaic.version = 11 : i64} {
  func.func @graphvae_kernel(%arg0: i32, %arg1: memref<16x48xf32, #tpu.memory_space<vmem>>, %arg2: memref<200x128xf32, #tpu.memory_space<vmem>>, %arg3: memref<16x128xf32, #tpu.memory_space<vmem>>) attributes {dimension_semantics = [#tpu.dimension_semantics<arbitrary>], iteration_bounds = array<i64: 1>, scalar_prefetch = 0 : i64, scratch_operands = 0 : i64, tpu.core_type = #tpu.core_type<tc>, window_params = [{pipeline_mode = #tpu.pipeline_mode<synchronous>, transform_indices = @transform_0, window_bounds = array<i64: 16, 48>}, {pipeline_mode = #tpu.pipeline_mode<synchronous>, transform_indices = @transform_1, window_bounds = array<i64: 200, 128>}, {pipeline_mode = #tpu.pipeline_mode<synchronous>, transform_indices = @transform_2, window_bounds = array<i64: 16, 128>}]} {
    %c0 = arith.constant 0 : index
    %c0_0 = arith.constant 0 : index
    %0 = vector.load %arg1[%c0, %c0_0] : memref<16x48xf32, #tpu.memory_space<vmem>>, vector<16x16xf32>
    %c0_1 = arith.constant 0 : index
    %c16 = arith.constant 16 : index
    %1 = vector.load %arg1[%c0_1, %c16] : memref<16x48xf32, #tpu.memory_space<vmem>>, vector<16x16xf32>
    %c0_2 = arith.constant 0 : index
    %c32 = arith.constant 32 : index
    %2 = vector.load %arg1[%c0_2, %c32] : memref<16x48xf32, #tpu.memory_space<vmem>>, vector<16x16xf32>
    %c0_3 = arith.constant 0 : index
    %c0_4 = arith.constant 0 : index
    %3 = vector.load %arg2[%c0_3, %c0_4] : memref<200x128xf32, #tpu.memory_space<vmem>>, vector<16x16xf32>
    %c16_5 = arith.constant 16 : index
    %c0_6 = arith.constant 0 : index
    %4 = vector.load %arg2[%c16_5, %c0_6] : memref<200x128xf32, #tpu.memory_space<vmem>>, vector<16x32xf32>
    %c32_7 = arith.constant 32 : index
    %c0_8 = arith.constant 0 : index
    %5 = vector.load %arg2[%c32_7, %c0_8] : memref<200x128xf32, #tpu.memory_space<vmem>>, vector<32x32xf32>
    %c64 = arith.constant 64 : index
    %c0_9 = arith.constant 0 : index
    %6 = vector.load %arg2[%c64, %c0_9] : memref<200x128xf32, #tpu.memory_space<vmem>>, vector<32x16xf32>
    %c96 = arith.constant 96 : index
    %c0_10 = arith.constant 0 : index
    %7 = vector.load %arg2[%c96, %c0_10] : memref<200x128xf32, #tpu.memory_space<vmem>>, vector<16x32xf32>
    %c112 = arith.constant 112 : index
    %c0_11 = arith.constant 0 : index
    %8 = vector.load %arg2[%c112, %c0_11] : memref<200x128xf32, #tpu.memory_space<vmem>>, vector<16x32xf32>
    %c128 = arith.constant 128 : index
    %c0_12 = arith.constant 0 : index
    %9 = vector.load %arg2[%c128, %c0_12] : memref<200x128xf32, #tpu.memory_space<vmem>>, vector<32x32xf32>
    %c160 = arith.constant 160 : index
    %c0_13 = arith.constant 0 : index
    %10 = vector.load %arg2[%c160, %c0_13] : memref<200x128xf32, #tpu.memory_space<vmem>>, vector<32x32xf32>
    %c192 = arith.constant 192 : index
    %c0_14 = arith.constant 0 : index
    %11 = vector.load %arg2[%c192, %c0_14] : memref<200x128xf32, #tpu.memory_space<vmem>>, vector<1x32xf32>
    %c193 = arith.constant 193 : index
    %c0_15 = arith.constant 0 : index
    %12 = vector.load %arg2[%c193, %c0_15] : memref<200x128xf32, #tpu.memory_space<vmem>>, vector<1x32xf32>
    %c194 = arith.constant 194 : index
    %c0_16 = arith.constant 0 : index
    %13 = vector.load %arg2[%c194, %c0_16] : memref<200x128xf32, #tpu.memory_space<vmem>>, vector<1x16xf32>
    %c195 = arith.constant 195 : index
    %c0_17 = arith.constant 0 : index
    %14 = vector.load %arg2[%c195, %c0_17] : memref<200x128xf32, #tpu.memory_space<vmem>>, vector<1x32xf32>
    %c196 = arith.constant 196 : index
    %c0_18 = arith.constant 0 : index
    %15 = vector.load %arg2[%c196, %c0_18] : memref<200x128xf32, #tpu.memory_space<vmem>>, vector<1x32xf32>
    %c197 = arith.constant 197 : index
    %c0_19 = arith.constant 0 : index
    %16 = vector.load %arg2[%c197, %c0_19] : memref<200x128xf32, #tpu.memory_space<vmem>>, vector<1x32xf32>
    %c198 = arith.constant 198 : index
    %c0_20 = arith.constant 0 : index
    %17 = vector.load %arg2[%c198, %c0_20] : memref<200x128xf32, #tpu.memory_space<vmem>>, vector<1x32xf32>
    %cst = arith.constant dense<0.000000e+00> : vector<16x32xf32>
    %18 = tpu.matmul %0, %4, %cst {dimension_numbers = #tpu.dot_dimension_numbers<[1], [0], [0], [1], [0, 0, 1, 1], [], []>} : vector<16x16xf32>, vector<16x32xf32>, vector<16x32xf32> -> vector<16x32xf32>
    %19 = vector.broadcast %11 : vector<1x32xf32> to vector<16x32xf32>
    %20 = arith.addf %18, %19 : vector<16x32xf32>
    %cst_21 = arith.constant 0.000000e+00 : f32
    %21 = vector.broadcast %cst_21 : f32 to vector<16x32xf32>
    %22 = arith.maximumf %20, %21 : vector<16x32xf32>
    %cst_22 = arith.constant dense<0.000000e+00> : vector<16x32xf32>
    %23 = tpu.matmul %22, %5, %cst_22 {dimension_numbers = #tpu.dot_dimension_numbers<[1], [0], [0], [1], [0, 0, 1, 1], [], []>} : vector<16x32xf32>, vector<32x32xf32>, vector<16x32xf32> -> vector<16x32xf32>
    %24 = vector.broadcast %12 : vector<1x32xf32> to vector<16x32xf32>
    %25 = arith.addf %23, %24 : vector<16x32xf32>
    %cst_23 = arith.constant 0.000000e+00 : f32
    %26 = vector.broadcast %cst_23 : f32 to vector<16x32xf32>
    %27 = arith.maximumf %25, %26 : vector<16x32xf32>
    %cst_24 = arith.constant dense<0.000000e+00> : vector<16x16xf32>
    %28 = tpu.matmul %27, %6, %cst_24 {dimension_numbers = #tpu.dot_dimension_numbers<[1], [0], [0], [1], [0, 0, 1, 1], [], []>} : vector<16x32xf32>, vector<32x16xf32>, vector<16x16xf32> -> vector<16x16xf32>
    %29 = vector.broadcast %13 : vector<1x16xf32> to vector<16x16xf32>
    %30 = arith.addf %28, %29 : vector<16x16xf32>
    %cst_25 = arith.constant dense<0.000000e+00> : vector<16x16xf32>
    %31 = tpu.matmul %3, %30, %cst_25 {dimension_numbers = #tpu.dot_dimension_numbers<[1], [0], [0], [1], [0, 0, 1, 1], [], []>} : vector<16x16xf32>, vector<16x16xf32>, vector<16x16xf32> -> vector<16x16xf32>
    %cst_26 = arith.constant dense<0.000000e+00> : vector<16x32xf32>
    %32 = tpu.matmul %31, %7, %cst_26 {dimension_numbers = #tpu.dot_dimension_numbers<[1], [0], [0], [1], [0, 0, 1, 1], [], []>} : vector<16x16xf32>, vector<16x32xf32>, vector<16x32xf32> -> vector<16x32xf32>
    %33 = vector.broadcast %14 : vector<1x32xf32> to vector<16x32xf32>
    %34 = arith.addf %32, %33 : vector<16x32xf32>
    %35 = vector.extract_strided_slice %34 {offsets = [0, 0], sizes = [16, 16], strides = [1, 1]} : vector<16x32xf32> to vector<16x16xf32>
    %36 = vector.extract_strided_slice %34 {offsets = [0, 16], sizes = [16, 16], strides = [1, 1]} : vector<16x32xf32> to vector<16x16xf32>
    %cst_27 = arith.constant 5.000000e-01 : f32
    %37 = vector.broadcast %cst_27 : f32 to vector<16x16xf32>
    %38 = arith.mulf %37, %36 : vector<16x16xf32>
    %39 = math.exp %38 : vector<16x16xf32>
    %40 = arith.mulf %39, %1 : vector<16x16xf32>
    %41 = arith.addf %35, %40 : vector<16x16xf32>
    %cst_28 = arith.constant dense<0.000000e+00> : vector<16x32xf32>
    %42 = tpu.matmul %41, %8, %cst_28 {dimension_numbers = #tpu.dot_dimension_numbers<[1], [0], [0], [1], [0, 0, 1, 1], [], []>} : vector<16x16xf32>, vector<16x32xf32>, vector<16x32xf32> -> vector<16x32xf32>
    %43 = vector.broadcast %15 : vector<1x32xf32> to vector<16x32xf32>
    %44 = arith.addf %42, %43 : vector<16x32xf32>
    %cst_29 = arith.constant 0.000000e+00 : f32
    %45 = vector.broadcast %cst_29 : f32 to vector<16x32xf32>
    %46 = arith.maximumf %44, %45 : vector<16x32xf32>
    %cst_30 = arith.constant dense<0.000000e+00> : vector<16x32xf32>
    %47 = tpu.matmul %46, %9, %cst_30 {dimension_numbers = #tpu.dot_dimension_numbers<[1], [0], [0], [1], [0, 0, 1, 1], [], []>} : vector<16x32xf32>, vector<32x32xf32>, vector<16x32xf32> -> vector<16x32xf32>
    %48 = vector.broadcast %16 : vector<1x32xf32> to vector<16x32xf32>
    %49 = arith.addf %47, %48 : vector<16x32xf32>
    %cst_31 = arith.constant 0.000000e+00 : f32
    %50 = vector.broadcast %cst_31 : f32 to vector<16x32xf32>
    %51 = arith.maximumf %49, %50 : vector<16x32xf32>
    %cst_32 = arith.constant dense<0.000000e+00> : vector<16x32xf32>
    %52 = tpu.matmul %51, %10, %cst_32 {dimension_numbers = #tpu.dot_dimension_numbers<[1], [0], [0], [1], [0, 0, 1, 1], [], []>} : vector<16x32xf32>, vector<32x32xf32>, vector<16x32xf32> -> vector<16x32xf32>
    %53 = vector.broadcast %17 : vector<1x32xf32> to vector<16x32xf32>
    %54 = arith.addf %52, %53 : vector<16x32xf32>
    %55 = vector.extract_strided_slice %54 {offsets = [0, 0], sizes = [16, 16], strides = [1, 1]} : vector<16x32xf32> to vector<16x16xf32>
    %56 = vector.extract_strided_slice %54 {offsets = [0, 16], sizes = [16, 16], strides = [1, 1]} : vector<16x32xf32> to vector<16x16xf32>
    %cst_33 = arith.constant 5.000000e-01 : f32
    %57 = vector.broadcast %cst_33 : f32 to vector<16x16xf32>
    %58 = arith.mulf %57, %56 : vector<16x16xf32>
    %59 = math.exp %58 : vector<16x16xf32>
    %60 = arith.mulf %59, %2 : vector<16x16xf32>
    %61 = arith.addf %55, %60 : vector<16x16xf32>
    %cst_34 = arith.constant 0.000000e+00 : f32
    %62 = vector.broadcast %cst_34 : f32 to vector<16x128xf32>
    %c0_35 = arith.constant 0 : index
    %c0_36 = arith.constant 0 : index
    %63 = vector.load %arg3[%c0_35, %c0_36] : memref<16x128xf32, #tpu.memory_space<vmem>>, vector<16x128xf32>
    tpu.vector_store %arg3[%c0_35, %c0_36], %62 {strides = array<i32>} : memref<16x128xf32, #tpu.memory_space<vmem>>, vector<16x128xf32>,
    %c0_37 = arith.constant 0 : index
    %c0_38 = arith.constant 0 : index
    %64 = vector.load %arg3[%c0_37, %c0_38] : memref<16x128xf32, #tpu.memory_space<vmem>>, vector<16x16xf32>
    tpu.vector_store %arg3[%c0_37, %c0_38], %61 {strides = array<i32>} : memref<16x128xf32, #tpu.memory_space<vmem>>, vector<16x16xf32>,
    %c0_39 = arith.constant 0 : index
    %c16_40 = arith.constant 16 : index
    %65 = vector.load %arg3[%c0_39, %c16_40] : memref<16x128xf32, #tpu.memory_space<vmem>>, vector<16x32xf32>
    tpu.vector_store %arg3[%c0_39, %c16_40], %54 {strides = array<i32>} : memref<16x128xf32, #tpu.memory_space<vmem>>, vector<16x32xf32>,
    %c0_41 = arith.constant 0 : index
    %c48 = arith.constant 48 : index
    %66 = vector.load %arg3[%c0_41, %c48] : memref<16x128xf32, #tpu.memory_space<vmem>>, vector<16x32xf32>
    tpu.vector_store %arg3[%c0_41, %c48], %34 {strides = array<i32>} : memref<16x128xf32, #tpu.memory_space<vmem>>, vector<16x32xf32>,
    return
  }
  func.func @transform_0(%arg0: i32) -> (i32, i32) {
    %c0_i32 = arith.constant 0 : i32
    %c0_i32_0 = arith.constant 0 : i32
    %c0_i32_1 = arith.constant 0 : i32
    return %c0_i32, %c0_i32_0 : i32, i32
  }
  func.func @transform_1(%arg0: i32) -> (i32, i32) {
    %c0_i32 = arith.constant 0 : i32
    %c0_i32_0 = arith.constant 0 : i32
    %c0_i32_1 = arith.constant 0 : i32
    return %c0_i32, %c0_i32_0 : i32, i32
  }
  func.func @transform_2(%arg0: i32) -> (i32, i32) {
    %c0_i32 = arith.constant 0 : i32
    %c0_i32_0 = arith.constant 0 : i32
    %c0_i32_1 = arith.constant 0 : i32
    return %c0_i32, %c0_i32_0 : i32, i32
  }
}

</mosaic_0001>

<llo_original>
// kernel: graphvae_forward.1
$region0: #{graphvae_forward.1}
  #allocation0 [shape = 'u32[]', space=smem, size = 0x4, offset = 0x4, fixed_abs, tag = 'smem constant byte address 0x4 - core index']
  #allocation1 [shape = 'u32[144,128]{1,0:T(1,128)}', space=vmem, size = 0x12000, scoped, tag = 'internal scratch']
  %s0 = inlined_call_operand.vmem [shape: f32[16,48], index: 0, kind: input, shape index: {}]
  %s1 = inlined_call_operand.vmem [shape: f32[200,128], index: 1, kind: input, shape index: {}]
  %s2 = inlined_call_operand.vmem [shape: f32[16,128], index: 2, kind: output, shape index: {}]
  %s3 = sld [smem:[#allocation0]]
  $region18: #{graphvae_forward.1} parent=0
    _
  %s5 = ssub.s32 1, %s3
  %s6 = scalar_select 0, %s5, %s3
  // Predicated region
  $region2: #{graphvae_forward.1} parent=0 // pred_check
    _
  $region3: #{graphvae_forward.1} parent=0 // pred_check_branch
    %8 = sbr.rel (0) target = $region5
  $region4: #{graphvae_forward.1} parent=0 // pred_region
    _
  $region5: #{graphvae_forward.1} parent=0 // pred_fallthru
    _
  // Predicated region
  $region6: #{graphvae_forward.1} parent=0 // pred_check
    _
  $region7: #{graphvae_forward.1} parent=0 // pred_check_branch
    %10 = sbr.rel (0) target = $region9
  $region8: #{graphvae_forward.1} parent=0 // pred_region
    _
  $region9: #{graphvae_forward.1} parent=0 // pred_fallthru
    _
  %v11 = vld [vmem:[%s0] sm:$0xff]
  %v12 = vld [vmem:[%s0 + $0x8] sm:$0xff]
  %v13 = vld [vmem:[%s1] sm:$0xff]
  %v14 = vld [vmem:[%s1 + $0x8] sm:$0xff]
  %v15 = vld [vmem:[%s1 + $0x10] sm:$0xff]
  %v16 = vld [vmem:[%s1 + $0x18] sm:$0xff]
  %v17 = vld [vmem:[%s1 + $0x20] sm:$0xff]
  %v18 = vld [vmem:[%s1 + $0x28] sm:$0xff]
  %v19 = vld [vmem:[%s1 + $0x30] sm:$0xff]
  %v20 = vld [vmem:[%s1 + $0x38] sm:$0xff]
  %v21 = vld [vmem:[%s1 + $0x40] sm:$0xff]
  %v22 = vld [vmem:[%s1 + $0x48] sm:$0xff]
  %v23 = vld [vmem:[%s1 + $0x50] sm:$0xff]
  %v24 = vld [vmem:[%s1 + $0x58] sm:$0xff]
  %v25 = vld [vmem:[%s1 + $0x60] sm:$0xff]
  %v26 = vld [vmem:[%s1 + $0x68] sm:$0xff]
  %v27 = vld [vmem:[%s1 + $0x70] sm:$0xff]
  %v28 = vld [vmem:[%s1 + $0x78] sm:$0xff]
  %v29 = vld [vmem:[%s1 + $0x80] sm:$0xff]
  %v30 = vld [vmem:[%s1 + $0x88] sm:$0xff]
  %v31 = vld [vmem:[%s1 + $0x90] sm:$0xff]
  %v32 = vld [vmem:[%s1 + $0x98] sm:$0xff]
  %v33 = vld [vmem:[%s1 + $0xa0] sm:$0xff]
  %v34 = vld [vmem:[%s1 + $0xa8] sm:$0xff]
  %v35 = vld [vmem:[%s1 + $0xb0] sm:$0xff]
  %v36 = vld [vmem:[%s1 + $0xb8] sm:$0xff]
  %v37 = vld [vmem:[%s1 + $0xc0] sm:$0x1]
  %v38 = vld [vmem:[%s1 + $0xc1] sm:$0x1]
  %v39 = vld [vmem:[%s1 + $0xc2] sm:$0x1]
  %v40 = vld [vmem:[%s1 + $0xc3] sm:$0x1]
  %v41 = vld [vmem:[%s1 + $0xc4] sm:$0x1]
  %v42 = vld [vmem:[%s1 + $0xc5] sm:$0x1]
  %v43 = vld [vmem:[%s1 + $0xc6] sm:$0x1]
  %v44 = vlaneseq
  %v45 = vshrl.u32 %v44, 7
  %v46 = vsub.s32 0, %v45
  %v47 = vrot.slane %v37, %v46
  %vm48 = vcmask 130048
  %v50 = vsel %vm48, %v11, 0
  %v53 = vsel %vm48, %v12, 0
  %55 = vmatprep.subr.mxu0 0.0
  %56 = vmatpush1.msra.mxu0 0.0
  %57 = vmatprep.subr.mxu0 0.0
  %58 = vmatpush1.msra.mxu0 0.0
  %59 = vmatprep.subr.mxu0 0.0
  %60 = vmatpush1.msra.mxu0 0.0
  %61 = vmatprep.subr.mxu0 0.0
  %62 = vmatpush1.msra.mxu0 0.0
  %63 = vmatprep.subr.mxu0 0.0
  %64 = vmatpush1.msra.mxu0 0.0
  %65 = vmatprep.subr.mxu0 0.0
  %66 = vmatpush1.msra.mxu0 0.0
  %67 = vmatprep.subr.mxu0 0.0
  %68 = vmatpush1.msra.mxu0 0.0
  %69 = vmatprep.subr.mxu0 0.0
  %70 = vmatpush1.msra.mxu0 0.0
  %71 = vmatprep.subr.mxu0 0.0
  %72 = vmatpush1.msra.mxu0 0.0
  %73 = vmatprep.subr.mxu0 0.0
  %74 = vmatpush1.msra.mxu0 0.0
  %75 = vmatprep.subr.mxu0 0.0
  %76 = vmatpush1.msra.mxu0 0.0
  %77 = vmatprep.subr.mxu0 0.0
  %78 = vmatpush1.msra.mxu0 0.0
  %79 = vmatprep.subr.mxu0 0.0
  %80 = vmatpush1.msra.mxu0 0.0
  %81 = vmatprep.subr.mxu0 0.0
  %82 = vmatpush1.msra.mxu0 0.0
  %83 = vmatprep.subr.mxu0 0.0
  %84 = vmatpush1.msra.mxu0 %v16
  %85 = vmatprep.subr.mxu0 0.0
  %86 = vmatpush1.msra.mxu0 %v15
  %87 = vmatprep.subr.mxu0 0.0
  %88 = vmatpush2.msra.mxu0 0.0
  %89 = vmatprep.subr.mxu0 0.0
  %90 = vmatpush2.msra.mxu0 0.0
  %91 = vmatprep.subr.mxu0 0.0
  %92 = vmatpush2.msra.mxu0 0.0
  %93 = vmatprep.subr.mxu0 0.0
  %94 = vmatpush2.msra.mxu0 0.0
  %95 = vmatprep.subr.mxu0 0.0
  %96 = vmatpush2.msra.mxu0 0.0
  %97 = vmatprep.subr.mxu0 0.0
  %98 = vmatpush2.msra.mxu0 0.0
  %99 = vmatprep.subr.mxu0 0.0
  %100 = vmatpush2.msra.mxu0 0.0
  %101 = vmatprep.subr.mxu0 0.0
  %102 = vmatpush2.msra.mxu0 0.0
  %103 = vmatprep.subr.mxu0 0.0
  %104 = vmatpush2.msra.mxu0 0.0
  %105 = vmatprep.subr.mxu0 0.0
  %106 = vmatpush2.msra.mxu0 0.0
  %107 = vmatprep.subr.mxu0 0.0
  %108 = vmatpush2.msra.mxu0 0.0
  %109 = vmatprep.subr.mxu0 0.0
  %110 = vmatpush2.msra.mxu0 0.0
  %111 = vmatprep.subr.mxu0 0.0
  %112 = vmatpush2.msra.mxu0 0.0
  %113 = vmatprep.subr.mxu0 0.0
  %114 = vmatpush2.msra.mxu0 0.0
  %115 = vmatprep.subr.mxu0 0.0
  %116 = vmatpush2.msra.mxu0 0.0
  %117 = vmatprep.subr.mxu0 0.0
  %118 = vmatpush2.msra.mxu0 0.0
  %119 = vmatprep.mubr.f32.mxu0 0.0
  %120 = vmatmul.mubr.f32.gmra.mxu0 %v50
  %v121 = vpop.f32.mrf.mxu0
  %v122 = vadd.f32 %v47, %v121
  %v123 = vpop.f32.mrf.mxu0
  %124 = vmatprep.mubr.f32.mxu0 0.0
  %125 = vmatmul.mubr.f32.gmra.mxu0 %v53
  %v126 = vpop.f32.mrf.mxu0
  %v127 = vadd.f32 %v47, %v126
  %v128 = vpop.f32.mrf.mxu0
  %129 = vdwg.mxu0
  %v130 = vmax.f32 %v122, 0.0
  %v131 = vmax.f32 %v127, 0.0
  %v132 = vlaneseq
  %v133 = vshrl.u32 %v132, 7
  %v134 = vsub.s32 0, %v133
  %v135 = vrot.slane %v38, %v134
  %vm136 = vcmask 261120
  %v138 = vsel %vm136, %v130, 0
  %v141 = vsel %vm136, %v131, 0
  %143 = vmatprep.subr.mxu0 0.0
  %144 = vmatpush1.msra.mxu0 0.0
  %145 = vmatprep.subr.mxu0 0.0
  %146 = vmatpush1.msra.mxu0 0.0
  %147 = vmatprep.subr.mxu0 0.0
  %148 = vmatpush1.msra.mxu0 0.0
  %149 = vmatprep.subr.mxu0 0.0
  %150 = vmatpush1.msra.mxu0 0.0
  %151 = vmatprep.subr.mxu0 0.0
  %152 = vmatpush1.msra.mxu0 0.0
  %153 = vmatprep.subr.mxu0 0.0
  %154 = vmatpush1.msra.mxu0 0.0
  %155 = vmatprep.subr.mxu0 0.0
  %156 = vmatpush1.msra.mxu0 0.0
  %157 = vmatprep.subr.mxu0 0.0
  %158 = vmatpush1.msra.mxu0 0.0
  %159 = vmatprep.subr.mxu0 0.0
  %160 = vmatpush1.msra.mxu0 0.0
  %161 = vmatprep.subr.mxu0 0.0
  %162 = vmatpush1.msra.mxu0 0.0
  %163 = vmatprep.subr.mxu0 0.0
  %164 = vmatpush1.msra.mxu0 0.0
  %165 = vmatprep.subr.mxu0 0.0
  %166 = vmatpush1.msra.mxu0 0.0
  %167 = vmatprep.subr.mxu0 0.0
  %168 = vmatpush1.msra.mxu0 %v20
  %169 = vmatprep.subr.mxu0 0.0
  %170 = vmatpush1.msra.mxu0 %v19
  %171 = vmatprep.subr.mxu0 0.0
  %172 = vmatpush1.msra.mxu0 %v18
  %173 = vmatprep.subr.mxu0 0.0
  %174 = vmatpush1.msra.mxu0 %v17
  %175 = vmatprep.subr.mxu0 0.0
  %176 = vmatpush2.msra.mxu0 0.0
  %177 = vmatprep.subr.mxu0 0.0
  %178 = vmatpush2.msra.mxu0 0.0
  %179 = vmatprep.subr.mxu0 0.0
  %180 = vmatpush2.msra.mxu0 0.0
  %181 = vmatprep.subr.mxu0 0.0
  %182 = vmatpush2.msra.mxu0 0.0
  %183 = vmatprep.subr.mxu0 0.0
  %184 = vmatpush2.msra.mxu0 0.0
  %185 = vmatprep.subr.mxu0 0.0
  %186 = vmatpush2.msra.mxu0 0.0
  %187 = vmatprep.subr.mxu0 0.0
  %188 = vmatpush2.msra.mxu0 0.0
  %189 = vmatprep.subr.mxu0 0.0
  %190 = vmatpush2.msra.mxu0 0.0
  %191 = vmatprep.subr.mxu0 0.0
  %192 = vmatpush2.msra.mxu0 0.0
  %193 = vmatprep.subr.mxu0 0.0
  %194 = vmatpush2.msra.mxu0 0.0
  %195 = vmatprep.subr.mxu0 0.0
  %196 = vmatpush2.msra.mxu0 0.0
  %197 = vmatprep.subr.mxu0 0.0
  %198 = vmatpush2.msra.mxu0 0.0
  %199 = vmatprep.subr.mxu0 0.0
  %200 = vmatpush2.msra.mxu0 0.0
  %201 = vmatprep.subr.mxu0 0.0
  %202 = vmatpush2.msra.mxu0 0.0
  %203 = vmatprep.subr.mxu0 0.0
  %204 = vmatpush2.msra.mxu0 0.0
  %205 = vmatprep.subr.mxu0 0.0
  %206 = vmatpush2.msra.mxu0 0.0
  %207 = vmatprep.mubr.f32.mxu0 0.0
  %208 = vmatmul.mubr.f32.gmra.mxu0 %v138
  %v209 = vpop.f32.mrf.mxu0
  %v210 = vadd.f32 %v135, %v209
  %v211 = vpop.f32.mrf.mxu0
  %212 = vmatprep.mubr.f32.mxu0 0.0
  %213 = vmatmul.mubr.f32.gmra.mxu0 %v141
  %v214 = vpop.f32.mrf.mxu0
  %v215 = vadd.f32 %v135, %v214
  %v216 = vpop.f32.mrf.mxu0
  %217 = vdwg.mxu0
  %v218 = vmax.f32 %v210, 0.0
  %v219 = vmax.f32 %v215, 0.0
  %v220 = vlaneseq
  %v221 = vshrl.u32 %v220, 7
  %v222 = vsub.s32 0, %v221
  %v223 = vrot.slane %v39, %v222
  %v225 = vsel %vm136, %v218, 0
  %v228 = vsel %vm136, %v219, 0
  %230 = vmatprep.subr.mxu0 0.0
  %231 = vmatpush1.msra.mxu0 0.0
  %232 = vmatprep.subr.mxu0 0.0
  %233 = vmatpush1.msra.mxu0 0.0
  %234 = vmatprep.subr.mxu0 0.0
  %235 = vmatpush1.msra.mxu0 0.0
  %236 = vmatprep.subr.mxu0 0.0
  %237 = vmatpush1.msra.mxu0 0.0
  %238 = vmatprep.subr.mxu0 0.0
  %239 = vmatpush1.msra.mxu0 0.0
  %240 = vmatprep.subr.mxu0 0.0
  %241 = vmatpush1.msra.mxu0 0.0
  %242 = vmatprep.subr.mxu0 0.0
  %243 = vmatpush1.msra.mxu0 0.0
  %244 = vmatprep.subr.mxu0 0.0
  %245 = vmatpush1.msra.mxu0 0.0
  %246 = vmatprep.subr.mxu0 0.0
  %247 = vmatpush1.msra.mxu0 0.0
  %248 = vmatprep.subr.mxu0 0.0
  %249 = vmatpush1.msra.mxu0 0.0
  %250 = vmatprep.subr.mxu0 0.0
  %251 = vmatpush1.msra.mxu0 0.0
  %252 = vmatprep.subr.mxu0 0.0
  %253 = vmatpush1.msra.mxu0 0.0
  %254 = vmatprep.subr.mxu0 0.0
  %255 = vmatpush1.msra.mxu0 %v24
  %256 = vmatprep.subr.mxu0 0.0
  %257 = vmatpush1.msra.mxu0 %v23
  %258 = vmatprep.subr.mxu0 0.0
  %259 = vmatpush1.msra.mxu0 %v22
  %260 = vmatprep.subr.mxu0 0.0
  %261 = vmatpush1.msra.mxu0 %v21
  %262 = vmatprep.subr.mxu0 0.0
  %263 = vmatpush2.msra.mxu0 0.0
  %264 = vmatprep.subr.mxu0 0.0
  %265 = vmatpush2.msra.mxu0 0.0
  %266 = vmatprep.subr.mxu0 0.0
  %267 = vmatpush2.msra.mxu0 0.0
  %268 = vmatprep.subr.mxu0 0.0
  %269 = vmatpush2.msra.mxu0 0.0
  %270 = vmatprep.subr.mxu0 0.0
  %271 = vmatpush2.msra.mxu0 0.0
  %272 = vmatprep.subr.mxu0 0.0
  %273 = vmatpush2.msra.mxu0 0.0
  %274 = vmatprep.subr.mxu0 0.0
  %275 = vmatpush2.msra.mxu0 0.0
  %276 = vmatprep.subr.mxu0 0.0
  %277 = vmatpush2.msra.mxu0 0.0
  %278 = vmatprep.subr.mxu0 0.0
  %279 = vmatpush2.msra.mxu0 0.0
  %280 = vmatprep.subr.mxu0 0.0
  %281 = vmatpush2.msra.mxu0 0.0
  %282 = vmatprep.subr.mxu0 0.0
  %283 = vmatpush2.msra.mxu0 0.0
  %284 = vmatprep.subr.mxu0 0.0
  %285 = vmatpush2.msra.mxu0 0.0
  %286 = vmatprep.subr.mxu0 0.0
  %287 = vmatpush2.msra.mxu0 0.0
  %288 = vmatprep.subr.mxu0 0.0
  %289 = vmatpush2.msra.mxu0 0.0
  %290 = vmatprep.subr.mxu0 0.0
  %291 = vmatpush2.msra.mxu0 0.0
  %292 = vmatprep.subr.mxu0 0.0
  %293 = vmatpush2.msra.mxu0 0.0
  %294 = vmatprep.mubr.f32.mxu0 0.0
  %295 = vmatmul.mubr.f32.gmra.mxu0 %v225
  %v296 = vpop.f32.mrf.mxu0
  %v297 = vadd.f32 %v223, %v296
  %v298 = vpop.f32.mrf.mxu0
  %299 = vmatprep.mubr.f32.mxu0 0.0
  %300 = vmatmul.mubr.f32.gmra.mxu0 %v228
  %v301 = vpop.f32.mrf.mxu0
  %v302 = vadd.f32 %v223, %v301
  %v303 = vpop.f32.mrf.mxu0
  %304 = vdwg.mxu0
  %v306 = vsel %vm48, %v13, 0
  %v309 = vsel %vm48, %v14, 0
  %311 = vmatprep.subr.mxu0 0.0
  %312 = vmatpush1.msra.mxu0 0.0
  %313 = vmatprep.subr.mxu0 0.0
  %314 = vmatpush1.msra.mxu0 0.0
  %315 = vmatprep.subr.mxu0 0.0
  %316 = vmatpush1.msra.mxu0 0.0
  %317 = vmatprep.subr.mxu0 0.0
  %318 = vmatpush1.msra.mxu0 0.0
  %319 = vmatprep.subr.mxu0 0.0
  %320 = vmatpush1.msra.mxu0 0.0
  %321 = vmatprep.subr.mxu0 0.0
  %322 = vmatpush1.msra.mxu0 0.0
  %323 = vmatprep.subr.mxu0 0.0
  %324 = vmatpush1.msra.mxu0 0.0
  %325 = vmatprep.subr.mxu0 0.0
  %326 = vmatpush1.msra.mxu0 0.0
  %327 = vmatprep.subr.mxu0 0.0
  %328 = vmatpush1.msra.mxu0 0.0
  %329 = vmatprep.subr.mxu0 0.0
  %330 = vmatpush1.msra.mxu0 0.0
  %331 = vmatprep.subr.mxu0 0.0
  %332 = vmatpush1.msra.mxu0 0.0
  %333 = vmatprep.subr.mxu0 0.0
  %334 = vmatpush1.msra.mxu0 0.0
  %335 = vmatprep.subr.mxu0 0.0
  %336 = vmatpush1.msra.mxu0 0.0
  %337 = vmatprep.subr.mxu0 0.0
  %338 = vmatpush1.msra.mxu0 0.0
  %339 = vmatprep.subr.mxu0 0.0
  %340 = vmatpush1.msra.mxu0 %v302
  %341 = vmatprep.subr.mxu0 0.0
  %342 = vmatpush1.msra.mxu0 %v297
  %343 = vmatprep.subr.mxu0 0.0
  %344 = vmatpush2.msra.mxu0 0.0
  %345 = vmatprep.subr.mxu0 0.0
  %346 = vmatpush2.msra.mxu0 0.0
  %347 = vmatprep.subr.mxu0 0.0
  %348 = vmatpush2.msra.mxu0 0.0
  %349 = vmatprep.subr.mxu0 0.0
  %350 = vmatpush2.msra.mxu0 0.0
  %351 = vmatprep.subr.mxu0 0.0
  %352 = vmatpush2.msra.mxu0 0.0
  %353 = vmatprep.subr.mxu0 0.0
  %354 = vmatpush2.msra.mxu0 0.0
  %355 = vmatprep.subr.mxu0 0.0
  %356 = vmatpush2.msra.mxu0 0.0
  %357 = vmatprep.subr.mxu0 0.0
  %358 = vmatpush2.msra.mxu0 0.0
  %359 = vmatprep.subr.mxu0 0.0
  %360 = vmatpush2.msra.mxu0 0.0
  %361 = vmatprep.subr.mxu0 0.0
  %362 = vmatpush2.msra.mxu0 0.0
  %363 = vmatprep.subr.mxu0 0.0
  %364 = vmatpush2.msra.mxu0 0.0
  %365 = vmatprep.subr.mxu0 0.0
  %366 = vmatpush2.msra.mxu0 0.0
  %367 = vmatprep.subr.mxu0 0.0
  %368 = vmatpush2.msra.mxu0 0.0
  %369 = vmatprep.subr.mxu0 0.0
  %370 = vmatpush2.msra.mxu0 0.0
  %371 = vmatprep.subr.mxu0 0.0
  %372 = vmatpush2.msra.mxu0 0.0
  %373 = vmatprep.subr.mxu0 0.0
  %374 = vmatpush2.msra.mxu0 0.0
  %375 = vmatprep.mubr.f32.mxu0 0.0
  %376 = vmatmul.mubr.f32.gmra.mxu0 %v306
  %v377 = vpop.f32.mrf.mxu0
  %v378 = vadd.f32 0.0, %v377
  %v379 = vpop.f32.mrf.mxu0
  %380 = vmatprep.mubr.f32.mxu0 0.0
  %381 = vmatmul.mubr.f32.gmra.mxu0 %v309
  %v382 = vpop.f32.mrf.mxu0
  %v383 = vadd.f32 0.0, %v382
  %v384 = vpop.f32.mrf.mxu0
  %385 = vdwg.mxu0
  %v386 = vlaneseq
  %v387 = vshrl.u32 %v386, 7
  %v388 = vsub.s32 0, %v387
  %v389 = vrot.slane %v40, %v388
  %v391 = vsel %vm48, %v378, 0
  %v394 = vsel %vm48, %v383, 0
  %396 = vmatprep.subr.mxu0 0.0
  %397 = vmatpush1.msra.mxu0 0.0
  %398 = vmatprep.subr.mxu0 0.0
  %399 = vmatpush1.msra.mxu0 0.0
  %400 = vmatprep.subr.mxu0 0.0
  %401 = vmatpush1.msra.mxu0 0.0
  %402 = vmatprep.subr.mxu0 0.0
  %403 = vmatpush1.msra.mxu0 0.0
  %404 = vmatprep.subr.mxu0 0.0
  %405 = vmatpush1.msra.mxu0 0.0
  %406 = vmatprep.subr.mxu0 0.0
  %407 = vmatpush1.msra.mxu0 0.0
  %408 = vmatprep.subr.mxu0 0.0
  %409 = vmatpush1.msra.mxu0 0.0
  %410 = vmatprep.subr.mxu0 0.0
  %411 = vmatpush1.msra.mxu0 0.0
  %412 = vmatprep.subr.mxu0 0.0
  %413 = vmatpush1.msra.mxu0 0.0
  %414 = vmatprep.subr.mxu0 0.0
  %415 = vmatpush1.msra.mxu0 0.0
  %416 = vmatprep.subr.mxu0 0.0
  %417 = vmatpush1.msra.mxu0 0.0
  %418 = vmatprep.subr.mxu0 0.0
  %419 = vmatpush1.msra.mxu0 0.0
  %420 = vmatprep.subr.mxu0 0.0
  %421 = vmatpush1.msra.mxu0 0.0
  %422 = vmatprep.subr.mxu0 0.0
  %423 = vmatpush1.msra.mxu0 0.0
  %424 = vmatprep.subr.mxu0 0.0
  %425 = vmatpush1.msra.mxu0 %v26
  %426 = vmatprep.subr.mxu0 0.0
  %427 = vmatpush1.msra.mxu0 %v25
  %428 = vmatprep.subr.mxu0 0.0
  %429 = vmatpush2.msra.mxu0 0.0
  %430 = vmatprep.subr.mxu0 0.0
  %431 = vmatpush2.msra.mxu0 0.0
  %432 = vmatprep.subr.mxu0 0.0
  %433 = vmatpush2.msra.mxu0 0.0
  %434 = vmatprep.subr.mxu0 0.0
  %435 = vmatpush2.msra.mxu0 0.0
  %436 = vmatprep.subr.mxu0 0.0
  %437 = vmatpush2.msra.mxu0 0.0
  %438 = vmatprep.subr.mxu0 0.0
  %439 = vmatpush2.msra.mxu0 0.0
  %440 = vmatprep.subr.mxu0 0.0
  %441 = vmatpush2.msra.mxu0 0.0
  %442 = vmatprep.subr.mxu0 0.0
  %443 = vmatpush2.msra.mxu0 0.0
  %444 = vmatprep.subr.mxu0 0.0
  %445 = vmatpush2.msra.mxu0 0.0
  %446 = vmatprep.subr.mxu0 0.0
  %447 = vmatpush2.msra.mxu0 0.0
  %448 = vmatprep.subr.mxu0 0.0
  %449 = vmatpush2.msra.mxu0 0.0
  %450 = vmatprep.subr.mxu0 0.0
  %451 = vmatpush2.msra.mxu0 0.0
  %452 = vmatprep.subr.mxu0 0.0
  %453 = vmatpush2.msra.mxu0 0.0
  %454 = vmatprep.subr.mxu0 0.0
  %455 = vmatpush2.msra.mxu0 0.0
  %456 = vmatprep.subr.mxu0 0.0
  %457 = vmatpush2.msra.mxu0 0.0
  %458 = vmatprep.subr.mxu0 0.0
  %459 = vmatpush2.msra.mxu0 0.0
  %460 = vmatprep.mubr.f32.mxu0 0.0
  %461 = vmatmul.mubr.f32.gmra.mxu0 %v391
  %v462 = vpop.f32.mrf.mxu0
  %v463 = vadd.f32 %v389, %v462
  %v464 = vpop.f32.mrf.mxu0
  %465 = vmatprep.mubr.f32.mxu0 0.0
  %466 = vmatmul.mubr.f32.gmra.mxu0 %v394
  %v467 = vpop.f32.mrf.mxu0
  %v468 = vadd.f32 %v389, %v467
  %v469 = vpop.f32.mrf.mxu0
  %470 = vdwg.mxu0
  %v471 = vmul.f32 %v463, 0.5
  %v472 = vmul.f32 %v468, 0.5
  %v473 = vmul.f32 %v471, 1.442695
  %v474 = vpow.pop %v473
  %v475 = vmul.f32 %v472, 1.442695
  %v476 = vpow.pop %v475
  %v477 = vmul.f32 %v474, %v11
  %v478 = vmul.f32 %v476, %v12
  %481 = vrot.lane.b32.xlu0 %v477, 112
  %v482 = vpop.permute.xlu0 %481
  %483 = vrot.lane.b32.xlu0 %v478, 112
  %v484 = vpop.permute.xlu0 %483
  %v487 = vadd.f32 %v463, %v482
  %v488 = vadd.f32 %v468, %v484
  %v489 = vlaneseq
  %v490 = vshrl.u32 %v489, 7
  %v491 = vsub.s32 0, %v490
  %v492 = vrot.slane %v41, %v491
  %v494 = vsel %vm48, %v487, 0
  %v497 = vsel %vm48, %v488, 0
  %499 = vmatprep.subr.mxu0 0.0
  %500 = vmatpush1.msra.mxu0 0.0
  %501 = vmatprep.subr.mxu0 0.0
  %502 = vmatpush1.msra.mxu0 0.0
  %503 = vmatprep.subr.mxu0 0.0
  %504 = vmatpush1.msra.mxu0 0.0
  %505 = vmatprep.subr.mxu0 0.0
  %506 = vmatpush1.msra.mxu0 0.0
  %507 = vmatprep.subr.mxu0 0.0
  %508 = vmatpush1.msra.mxu0 0.0
  %509 = vmatprep.subr.mxu0 0.0
  %510 = vmatpush1.msra.mxu0 0.0
  %511 = vmatprep.subr.mxu0 0.0
  %512 = vmatpush1.msra.mxu0 0.0
  %513 = vmatprep.subr.mxu0 0.0
  %514 = vmatpush1.msra.mxu0 0.0
  %515 = vmatprep.subr.mxu0 0.0
  %516 = vmatpush1.msra.mxu0 0.0
  %517 = vmatprep.subr.mxu0 0.0
  %518 = vmatpush1.msra.mxu0 0.0
  %519 = vmatprep.subr.mxu0 0.0
  %520 = vmatpush1.msra.mxu0 0.0
  %521 = vmatprep.subr.mxu0 0.0
  %522 = vmatpush1.msra.mxu0 0.0
  %523 = vmatprep.subr.mxu0 0.0
  %524 = vmatpush1.msra.mxu0 0.0
  %525 = vmatprep.subr.mxu0 0.0
  %526 = vmatpush1.msra.mxu0 0.0
  %527 = vmatprep.subr.mxu0 0.0
  %528 = vmatpush1.msra.mxu0 %v28
  %529 = vmatprep.subr.mxu0 0.0
  %530 = vmatpush1.msra.mxu0 %v27
  %531 = vmatprep.subr.mxu0 0.0
  %532 = vmatpush2.msra.mxu0 0.0
  %533 = vmatprep.subr.mxu0 0.0
  %534 = vmatpush2.msra.mxu0 0.0
  %535 = vmatprep.subr.mxu0 0.0
  %536 = vmatpush2.msra.mxu0 0.0
  %537 = vmatprep.subr.mxu0 0.0
  %538 = vmatpush2.msra.mxu0 0.0
  %539 = vmatprep.subr.mxu0 0.0
  %540 = vmatpush2.msra.mxu0 0.0
  %541 = vmatprep.subr.mxu0 0.0
  %542 = vmatpush2.msra.mxu0 0.0
  %543 = vmatprep.subr.mxu0 0.0
  %544 = vmatpush2.msra.mxu0 0.0
  %545 = vmatprep.subr.mxu0 0.0
  %546 = vmatpush2.msra.mxu0 0.0
  %547 = vmatprep.subr.mxu0 0.0
  %548 = vmatpush2.msra.mxu0 0.0
  %549 = vmatprep.subr.mxu0 0.0
  %550 = vmatpush2.msra.mxu0 0.0
  %551 = vmatprep.subr.mxu0 0.0
  %552 = vmatpush2.msra.mxu0 0.0
  %553 = vmatprep.subr.mxu0 0.0
  %554 = vmatpush2.msra.mxu0 0.0
  %555 = vmatprep.subr.mxu0 0.0
  %556 = vmatpush2.msra.mxu0 0.0
  %557 = vmatprep.subr.mxu0 0.0
  %558 = vmatpush2.msra.mxu0 0.0
  %559 = vmatprep.subr.mxu0 0.0
  %560 = vmatpush2.msra.mxu0 0.0
  %561 = vmatprep.subr.mxu0 0.0
  %562 = vmatpush2.msra.mxu0 0.0
  %563 = vmatprep.mubr.f32.mxu0 0.0
  %564 = vmatmul.mubr.f32.gmra.mxu0 %v494
  %v565 = vpop.f32.mrf.mxu0
  %v566 = vadd.f32 %v492, %v565
  %v567 = vpop.f32.mrf.mxu0
  %568 = vmatprep.mubr.f32.mxu0 0.0
  %569 = vmatmul.mubr.f32.gmra.mxu0 %v497
  %v570 = vpop.f32.mrf.mxu0
  %v571 = vadd.f32 %v492, %v570
  %v572 = vpop.f32.mrf.mxu0
  %573 = vdwg.mxu0
  %v574 = vmax.f32 %v566, 0.0
  %v575 = vmax.f32 %v571, 0.0
  %v576 = vlaneseq
  %v577 = vshrl.u32 %v576, 7
  %v578 = vsub.s32 0, %v577
  %v579 = vrot.slane %v42, %v578
  %v581 = vsel %vm136, %v574, 0
  %v584 = vsel %vm136, %v575, 0
  %586 = vmatprep.subr.mxu0 0.0
  %587 = vmatpush1.msra.mxu0 0.0
  %588 = vmatprep.subr.mxu0 0.0
  %589 = vmatpush1.msra.mxu0 0.0
  %590 = vmatprep.subr.mxu0 0.0
  %591 = vmatpush1.msra.mxu0 0.0
  %592 = vmatprep.subr.mxu0 0.0
  %593 = vmatpush1.msra.mxu0 0.0
  %594 = vmatprep.subr.mxu0 0.0
  %595 = vmatpush1.msra.mxu0 0.0
  %596 = vmatprep.subr.mxu0 0.0
  %597 = vmatpush1.msra.mxu0 0.0
  %598 = vmatprep.subr.mxu0 0.0
  %599 = vmatpush1.msra.mxu0 0.0
  %600 = vmatprep.subr.mxu0 0.0
  %601 = vmatpush1.msra.mxu0 0.0
  %602 = vmatprep.subr.mxu0 0.0
  %603 = vmatpush1.msra.mxu0 0.0
  %604 = vmatprep.subr.mxu0 0.0
  %605 = vmatpush1.msra.mxu0 0.0
  %606 = vmatprep.subr.mxu0 0.0
  %607 = vmatpush1.msra.mxu0 0.0
  %608 = vmatprep.subr.mxu0 0.0
  %609 = vmatpush1.msra.mxu0 0.0
  %610 = vmatprep.subr.mxu0 0.0
  %611 = vmatpush1.msra.mxu0 %v32
  %612 = vmatprep.subr.mxu0 0.0
  %613 = vmatpush1.msra.mxu0 %v31
  %614 = vmatprep.subr.mxu0 0.0
  %615 = vmatpush1.msra.mxu0 %v30
  %616 = vmatprep.subr.mxu0 0.0
  %617 = vmatpush1.msra.mxu0 %v29
  %618 = vmatprep.subr.mxu0 0.0
  %619 = vmatpush2.msra.mxu0 0.0
  %620 = vmatprep.subr.mxu0 0.0
  %621 = vmatpush2.msra.mxu0 0.0
  %622 = vmatprep.subr.mxu0 0.0
  %623 = vmatpush2.msra.mxu0 0.0
  %624 = vmatprep.subr.mxu0 0.0
  %625 = vmatpush2.msra.mxu0 0.0
  %626 = vmatprep.subr.mxu0 0.0
  %627 = vmatpush2.msra.mxu0 0.0
  %628 = vmatprep.subr.mxu0 0.0
  %629 = vmatpush2.msra.mxu0 0.0
  %630 = vmatprep.subr.mxu0 0.0
  %631 = vmatpush2.msra.mxu0 0.0
  %632 = vmatprep.subr.mxu0 0.0
  %633 = vmatpush2.msra.mxu0 0.0
  %634 = vmatprep.subr.mxu0 0.0
  %635 = vmatpush2.msra.mxu0 0.0
  %636 = vmatprep.subr.mxu0 0.0
  %637 = vmatpush2.msra.mxu0 0.0
  %638 = vmatprep.subr.mxu0 0.0
  %639 = vmatpush2.msra.mxu0 0.0
  %640 = vmatprep.subr.mxu0 0.0
  %641 = vmatpush2.msra.mxu0 0.0
  %642 = vmatprep.subr.mxu0 0.0
  %643 = vmatpush2.msra.mxu0 0.0
  %644 = vmatprep.subr.mxu0 0.0
  %645 = vmatpush2.msra.mxu0 0.0
  %646 = vmatprep.subr.mxu0 0.0
  %647 = vmatpush2.msra.mxu0 0.0
  %648 = vmatprep.subr.mxu0 0.0
  %649 = vmatpush2.msra.mxu0 0.0
  %650 = vmatprep.mubr.f32.mxu0 0.0
  %651 = vmatmul.mubr.f32.gmra.mxu0 %v581
  %v652 = vpop.f32.mrf.mxu0
  %v653 = vadd.f32 %v579, %v652
  %v654 = vpop.f32.mrf.mxu0
  %655 = vmatprep.mubr.f32.mxu0 0.0
  %656 = vmatmul.mubr.f32.gmra.mxu0 %v584
  %v657 = vpop.f32.mrf.mxu0
  %v658 = vadd.f32 %v579, %v657
  %v659 = vpop.f32.mrf.mxu0
  %660 = vdwg.mxu0
  %v661 = vmax.f32 %v653, 0.0
  %v662 = vmax.f32 %v658, 0.0
  %v663 = vlaneseq
  %v664 = vshrl.u32 %v663, 7
  %v665 = vsub.s32 0, %v664
  %v666 = vrot.slane %v43, %v665
  %v668 = vsel %vm136, %v661, 0
  %v671 = vsel %vm136, %v662, 0
  %673 = vmatprep.subr.mxu0 0.0
  %674 = vmatpush1.msra.mxu0 0.0
  %675 = vmatprep.subr.mxu0 0.0
  %676 = vmatpush1.msra.mxu0 0.0
  %677 = vmatprep.subr.mxu0 0.0
  %678 = vmatpush1.msra.mxu0 0.0
  %679 = vmatprep.subr.mxu0 0.0
  %680 = vmatpush1.msra.mxu0 0.0
  %681 = vmatprep.subr.mxu0 0.0
  %682 = vmatpush1.msra.mxu0 0.0
  %683 = vmatprep.subr.mxu0 0.0
  %684 = vmatpush1.msra.mxu0 0.0
  %685 = vmatprep.subr.mxu0 0.0
  %686 = vmatpush1.msra.mxu0 0.0
  %687 = vmatprep.subr.mxu0 0.0
  %688 = vmatpush1.msra.mxu0 0.0
  %689 = vmatprep.subr.mxu0 0.0
  %690 = vmatpush1.msra.mxu0 0.0
  %691 = vmatprep.subr.mxu0 0.0
  %692 = vmatpush1.msra.mxu0 0.0
  %693 = vmatprep.subr.mxu0 0.0
  %694 = vmatpush1.msra.mxu0 0.0
  %695 = vmatprep.subr.mxu0 0.0
  %696 = vmatpush1.msra.mxu0 0.0
  %697 = vmatprep.subr.mxu0 0.0
  %698 = vmatpush1.msra.mxu0 %v36
  %699 = vmatprep.subr.mxu0 0.0
  %700 = vmatpush1.msra.mxu0 %v35
  %701 = vmatprep.subr.mxu0 0.0
  %702 = vmatpush1.msra.mxu0 %v34
  %703 = vmatprep.subr.mxu0 0.0
  %704 = vmatpush1.msra.mxu0 %v33
  %705 = vmatprep.subr.mxu0 0.0
  %706 = vmatpush2.msra.mxu0 0.0
  %707 = vmatprep.subr.mxu0 0.0
  %708 = vmatpush2.msra.mxu0 0.0
  %709 = vmatprep.subr.mxu0 0.0
  %710 = vmatpush2.msra.mxu0 0.0
  %711 = vmatprep.subr.mxu0 0.0
  %712 = vmatpush2.msra.mxu0 0.0
  %713 = vmatprep.subr.mxu0 0.0
  %714 = vmatpush2.msra.mxu0 0.0
  %715 = vmatprep.subr.mxu0 0.0
  %716 = vmatpush2.msra.mxu0 0.0
  %717 = vmatprep.subr.mxu0 0.0
  %718 = vmatpush2.msra.mxu0 0.0
  %719 = vmatprep.subr.mxu0 0.0
  %720 = vmatpush2.msra.mxu0 0.0
  %721 = vmatprep.subr.mxu0 0.0
  %722 = vmatpush2.msra.mxu0 0.0
  %723 = vmatprep.subr.mxu0 0.0
  %724 = vmatpush2.msra.mxu0 0.0
  %725 = vmatprep.subr.mxu0 0.0
  %726 = vmatpush2.msra.mxu0 0.0
  %727 = vmatprep.subr.mxu0 0.0
  %728 = vmatpush2.msra.mxu0 0.0
  %729 = vmatprep.subr.mxu0 0.0
  %730 = vmatpush2.msra.mxu0 0.0
  %731 = vmatprep.subr.mxu0 0.0
  %732 = vmatpush2.msra.mxu0 0.0
  %733 = vmatprep.subr.mxu0 0.0
  %734 = vmatpush2.msra.mxu0 0.0
  %735 = vmatprep.subr.mxu0 0.0
  %736 = vmatpush2.msra.mxu0 0.0
  %737 = vmatprep.mubr.f32.mxu0 0.0
  %738 = vmatmul.mubr.f32.gmra.mxu0 %v668
  %v739 = vpop.f32.mrf.mxu0
  %v740 = vadd.f32 %v666, %v739
  %v741 = vpop.f32.mrf.mxu0
  %742 = vmatprep.mubr.f32.mxu0 0.0
  %743 = vmatmul.mubr.f32.gmra.mxu0 %v671
  %v744 = vpop.f32.mrf.mxu0
  %v745 = vadd.f32 %v666, %v744
  %v746 = vpop.f32.mrf.mxu0
  %747 = vdwg.mxu0
  %v748 = vmul.f32 %v740, 0.5
  %v749 = vmul.f32 %v745, 0.5
  %v750 = vmul.f32 %v748, 1.442695
  %v751 = vpow.pop %v750
  %v752 = vmul.f32 %v749, 1.442695
  %v753 = vpow.pop %v752
  %754 = vrot.lane.b32.xlu0 %v11, 112
  %v755 = vpop.permute.xlu0 %754
  %756 = vrot.lane.b32.xlu0 %v12, 112
  %v757 = vpop.permute.xlu0 %756
  %v760 = vmul.f32 %v751, %v755
  %v761 = vmul.f32 %v753, %v757
  %764 = vrot.lane.b32.xlu0 %v760, 112
  %v765 = vpop.permute.xlu0 %764
  %766 = vrot.lane.b32.xlu0 %v761, 112
  %v767 = vpop.permute.xlu0 %766
  %v770 = vadd.f32 %v740, %v765
  %v771 = vadd.f32 %v745, %v767
  %772 = vst [vmem:[%s2] sm:$0xff] 0.0
  %773 = vst [vmem:[%s2 + $0x8] sm:$0xff] 0.0
  %774 = vst.msk [vmem:[%s2] sm:$0xff] %vm48, %v770
  %775 = vst.msk [vmem:[%s2 + $0x8] sm:$0xff] %vm48, %v771
  %778 = vrot.lane.b32.xlu0 %v740, 16
  %v779 = vpop.permute.xlu0 %778
  %780 = vrot.lane.b32.xlu0 %v745, 16
  %v781 = vpop.permute.xlu0 %780
  %vm784 = vcmask 392320
  %785 = vst.msk [vmem:[%s2] sm:$0xff] %vm784, %v779
  %786 = vst.msk [vmem:[%s2 + $0x8] sm:$0xff] %vm784, %v781
  %789 = vrot.lane.b32.xlu0 %v463, 48
  %v790 = vpop.permute.xlu0 %789
  %791 = vrot.lane.b32.xlu0 %v468, 48
  %v792 = vpop.permute.xlu0 %791
  %vm795 = vcmask 654720
  %796 = vst.msk [vmem:[%s2] sm:$0xff] %vm795, %v790
  %797 = vst.msk [vmem:[%s2 + $0x8] sm:$0xff] %vm795, %v792
  // Predicated region
  $region10: #{graphvae_forward.1} parent=0 // pred_check
    _
  $region11: #{graphvae_forward.1} parent=0 // pred_check_branch
    %799 = sbr.rel (0) target = $region13
  $region12: #{graphvae_forward.1} parent=0 // pred_region
    _
  $region13: #{graphvae_forward.1} parent=0 // pred_fallthru
    _
  // Predicated region
  $region14: #{graphvae_forward.1} parent=0 // pred_check
    _
  $region15: #{graphvae_forward.1} parent=0 // pred_check_branch
    %801 = sbr.rel (0) target = $region17
  $region16: #{graphvae_forward.1} parent=0 // pred_region
    _
  $region17: #{graphvae_forward.1} parent=0 // pred_fallthru
    _

</llo_original>
